<compile_context>
chip_gen: v5e
topology: v5e:2x2
jax: 0.10.0
libtpu: 0.0.40
codegen_flags: <defaults>
</compile_context>

<pallas_src>
import functools

import jax
import jax.numpy as jnp
from jax.experimental import pallas as pl
from jax.experimental.pallas import tpu as pltpu


def _vmem_gather_kernel(ids_ref, table_ref, out_ref):
    """Gather one tile of tokens from a VMEM-resident table.

    ids_ref   : SMEM (Np,) int32   -- all token ids (scalar-prefetched)
    table_ref : VMEM (V, D)        -- full embedding table (fetched once)
    out_ref   : VMEM (TILE, D)     -- output block for this grid step
    """
    tile = out_ref.shape[0]
    base = pl.program_id(0) * tile

    @pl.loop(0, tile)
    def _copy(j):
        row = ids_ref[base + j]
        out_ref[pl.ds(j, 1), :] = table_ref[pl.ds(row, 1), :]


def _dma_gather_kernel(ids_ref, table_hbm, out_ref, sem):
    """DMA row-gather for one tile of tokens (table stays in HBM).

    ids_ref   : SMEM (Np,) int32        -- all token ids (scalar-prefetched)
    table_hbm : HBM  (V, D) table dtype -- full embedding table, never in VMEM
    out_ref   : VMEM (TILE, D)          -- output block for this grid step
    sem       : DMA semaphore (1,)      -- shared by all row copies of the tile
    """
    tile = out_ref.shape[0]
    base = pl.program_id(0) * tile

    # Issue all row copies for this tile; they are all in flight concurrently.
    @pl.loop(0, tile)
    def _issue(j):
        row = ids_ref[base + j]
        pltpu.make_async_copy(table_hbm.at[row], out_ref.at[j], sem.at[0]).start()

    # Drain: each wait retires one row's worth of the shared semaphore, so
    # `tile` waits == all rows have landed in the output block.  (src/dst here
    # only define the per-row byte count; every row has the same size.)
    @pl.loop(0, tile)
    def _drain(j):
        pltpu.make_async_copy(table_hbm.at[0], out_ref.at[0], sem.at[0]).wait()


@functools.partial(jax.jit, static_argnames=("token_tile", "vmem_table_bytes"))
def code_emb_forward(input_ids, table, *, token_tile=256, vmem_table_bytes=8 << 20):
    """Equivalent of CodeEmb.forward: output = embedding(input_ids)."""
    B, S = input_ids.shape
    V, D = table.shape
    N = B * S

    ids_flat = input_ids.reshape(N).astype(jnp.int32)
    # Clip to the valid row range: an OOB id would otherwise be an OOB read
    # (PyTorch raises instead; there is no clean in-kernel error path).
    ids_flat = jnp.clip(ids_flat, 0, V - 1)

    # Tile: big (default 256) to amortize per-step overhead, but no bigger than
    # the (8-aligned) token count so tiny inputs don't over-pad.
    tile = min(token_tile, ((N + 7) // 8) * 8)
    tile = max(8, (tile // 8) * 8)

    # Pad the (tiny, int32) id vector so the token grid divides evenly; padded
    # slots look up row 0 (the padding row) and are sliced off below.
    pad = (-N) % tile
    if pad:
        ids_flat = jnp.pad(ids_flat, (0, pad))
    Np = ids_flat.shape[0]

    itemsize = jnp.dtype(table.dtype).itemsize
    table_bytes = V * D * itemsize
    out_shape = jax.ShapeDtypeStruct((Np, D), table.dtype)

    if table_bytes <= vmem_table_bytes:
        # Path 1: VMEM-resident table; constant block index => fetched once.
        vmem_budget = min(
            60 << 20,
            max(2 * table_bytes + 8 * tile * D * itemsize + (2 << 20), 32 << 20),
        )
        out = pl.pallas_call(
            _vmem_gather_kernel,
            out_shape=out_shape,
            grid_spec=pltpu.PrefetchScalarGridSpec(
                num_scalar_prefetch=1,                        # ids -> SMEM
                grid=(Np // tile,),
                in_specs=[pl.BlockSpec((V, D), lambda i, ids: (0, 0))],
                out_specs=pl.BlockSpec((tile, D), lambda i, ids: (i, 0)),
            ),
            compiler_params=pltpu.CompilerParams(
                dimension_semantics=("parallel",),            # v7x: 2 TCs split tokens
                vmem_limit_bytes=vmem_budget,                 # cover table on v5e's 16 MiB default
            ),
            cost_estimate=pl.CostEstimate(
                flops=0,
                transcendentals=0,
                bytes_accessed=table_bytes + 2 * Np * D * itemsize + Np * 4,
            ),
        )(ids_flat, table)
    else:
        # Path 2: table stays in HBM; per-row DMA gather straight into out.
        out = pl.pallas_call(
            _dma_gather_kernel,
            out_shape=out_shape,
            grid_spec=pltpu.PrefetchScalarGridSpec(
                num_scalar_prefetch=1,                        # ids -> SMEM
                grid=(Np // tile,),
                in_specs=[pl.BlockSpec(memory_space=pl.ANY)], # table stays in HBM
                out_specs=pl.BlockSpec((tile, D), lambda i, ids: (i, 0)),
                scratch_shapes=[pltpu.SemaphoreType.DMA((1,))],
            ),
            compiler_params=pltpu.CompilerParams(
                dimension_semantics=("parallel",),
            ),
            cost_estimate=pl.CostEstimate(
                flops=0,
                transcendentals=0,
                bytes_accessed=2 * Np * D * itemsize + Np * 4,
            ),
        )(ids_flat, table)

    return out[:N].reshape(B, S, D)


def init_embedding_table(key, index_size, embed_dim, dtype=jnp.float32):
    """nn.Embedding default init ~ N(0,1); padding_idx=0 -> row 0 zeroed."""
    w = jax.random.normal(key, (index_size, embed_dim), dtype=dtype)
    w = w.at[0].set(0.0)
    return w


# TODO(synk): checkpoint loading (torch.load of 'input_emb.weight') and the
# padding_idx gradient mask are training/IO concerns with no kernel equivalent;
# only the forward gather is implemented.

if __name__ == "__main__":
    # Shapes consistent with the module's forward:
    # index_size from index_size_dict['nonconcat']['mimic'] = 1889,
    # embed dim = args.pred_embed_dim, small (batch, seq) of code indices.
    index_size = 1889
    pred_embed_dim = 128
    B, S = 2, 8

    key = jax.random.PRNGKey(0)
    k_table, k_ids = jax.random.split(key)

    table = init_embedding_table(k_table, index_size, pred_embed_dim)
    input_ids = jax.random.randint(k_ids, (B, S), 0, index_size, dtype=jnp.int32)
    # force a couple of padding tokens (index 0) to exercise padding_idx=0
    input_ids = input_ids.at[0, 0].set(0).at[1, -1].set(0)

    ref = table[input_ids]

    # Path 1: VMEM-resident table (small vocabulary, default threshold).
    out = jax.block_until_ready(code_emb_forward(input_ids, table))
    assert out.shape == (B, S, pred_embed_dim), out.shape
    assert jnp.array_equal(out, ref), "VMEM-path mismatch vs reference"
    assert jnp.all(out[0, 0] == 0.0) and jnp.all(out[1, -1] == 0.0)

    # Path 2: HBM DMA row-gather (forced by a zero VMEM-table budget); this is
    # the path used for the large 'VA'/'DSVA' vocabularies (up to 104353 rows).
    out_dma = jax.block_until_ready(
        code_emb_forward(input_ids, table, vmem_table_bytes=0)
    )
    assert jnp.array_equal(out_dma, ref), "DMA-path mismatch vs reference"

    print("KERNEL_OK")
</pallas_src>

<mosaic_0001>
module attributes {stable_mosaic.version = 11 : i64} {
  func.func @_vmem_gather_kernel(%arg0: i32, %arg1: memref<16xi32, #tpu.memory_space<smem>>, %arg2: memref<1889x128xf32, #tpu.memory_space<vmem>>, %arg3: memref<16x128xf32, #tpu.memory_space<vmem>>) attributes {dimension_semantics = [#tpu.dimension_semantics<parallel>], iteration_bounds = array<i64: 1>, scalar_prefetch = 1 : i64, scratch_operands = 0 : i64, tpu.core_type = #tpu.core_type<tc>, window_params = [{pipeline_mode = #tpu.pipeline_mode<synchronous>, transform_indices = @transform_0, window_bounds = array<i64: 1889, 128>}, {transform_indices = @transform_1, window_bounds = array<i64: 16, 128>}]} {
    %c16_i32 = arith.constant 16 : i32
    %0 = arith.muli %arg0, %c16_i32 : i32
    %c0_i32 = arith.constant 0 : i32
    %c16_i32_0 = arith.constant 16 : i32
    %1 = arith.addi %c0_i32, %c16_i32_0 : i32
    %c1_i32 = arith.constant 1 : i32
    scf.for %arg4 = %c0_i32 to %1 step %c1_i32  : i32 {
      %c1_i32_2 = arith.constant 1 : i32
      %2 = arith.muli %arg4, %c1_i32_2 : i32
      %c0_i32_3 = arith.constant 0 : i32
      %3 = arith.addi %c0_i32_3, %2 : i32
      %4 = arith.addi %0, %3 : i32
      %5 = arith.index_cast %4 : i32 to index
      %6 = memref.load %arg1[%5] : memref<16xi32, #tpu.memory_space<smem>>
      %7 = arith.index_cast %6 : i32 to index
      %c0 = arith.constant 0 : index
      %8 = vector.load %arg2[%7, %c0] : memref<1889x128xf32, #tpu.memory_space<vmem>>, vector<1x128xf32>
      %9 = arith.index_cast %3 : i32 to index
      %c0_4 = arith.constant 0 : index
      %10 = vector.load %arg3[%9, %c0_4] : memref<16x128xf32, #tpu.memory_space<vmem>>, vector<1x128xf32>
      tpu.vector_store %arg3[%9, %c0_4], %8 {strides = array<i32>} : memref<16x128xf32, #tpu.memory_space<vmem>>, vector<1x128xf32>,
    }
    %c16_i32_1 = arith.constant 16 : i32
    return
  }
  func.func @transform_0(%arg0: i32, %arg1: memref<16xi32, #tpu.memory_space<smem>>) -> (i32, i32) {
    %c0_i32 = arith.constant 0 : i32
    %c0_i32_0 = arith.constant 0 : i32
    %c0_i32_1 = arith.constant 0 : i32
    return %c0_i32, %c0_i32_0 : i32, i32
  }
  func.func @transform_1(%arg0: i32, %arg1: memref<16xi32, #tpu.memory_space<smem>>) -> (i32, i32) {
    %c0_i32 = arith.constant 0 : i32
    %c0_i32_0 = arith.constant 0 : i32
    return %arg0, %c0_i32 : i32, i32
  }
}

</mosaic_0001>

<llo_original>
// kernel: code_emb_forward.1
$region0: #{code_emb_forward.1}
  #allocation0 [shape = 'u32[]', space=smem, size = 0x4, offset = 0x4, fixed_abs, tag = 'smem constant byte address 0x4 - core index']
  #allocation1 [shape = 'u32[72,128]{1,0:T(1,128)}', space=vmem, size = 0x9000, scoped, tag = 'internal scratch']
  #allocation2 [shape = 's32[1]{0}', space=sflag, size = 0x4, scoped, tag = 'scoped memory for code_emb_forward.1']
  #allocation3 [shape = 'u8[512]{0}', space=smem, size = 0x200, scoped, tag = 'prefetched SMEM operand 0']
  %s0 = inlined_call_operand.vmem [shape: s32[16], index: 0, kind: input, shape index: {}]
  %s1 = inlined_call_operand.hbm [shape: f32[1889,128], index: 1, kind: input, shape index: {}]
  %s2 = inlined_call_operand.hbm [shape: f32[16,128], index: 2, kind: output, shape index: {}]
  %s3 = sld [smem:[#allocation0]]
  $region25: #{code_emb_forward.1} parent=0
    _
  %s5 = ssub.s32 1, %s3
  %s6 = scalar_select 0, %s5, %s3
  %s8 = sshll.u32 %s0, 4
  %s9 = int_to_ptr.vmem [resolvable:$true] %s8
  %11 = dma.vmem_to_smem %s9, 16, [#allocation3], [#allocation2]
  %13 = dma.done [#allocation2], 16
  %14 = sfence
  $region1: #{code_emb_forward.1} parent=0
    #allocation4 [shape = 'u8[970752]{0}', space=vmem, size = 0xed000, scoped, tag = 'input window, operand 1, single buffered']
    #allocation5 [shape = 's32[1]{0}', space=sflag, size = 0x4, scoped, tag = 'scoped memory for code_emb_forward.1']
    #allocation6 [shape = 's32[1]{0}', space=sflag, size = 0x4, scoped, tag = 'scoped memory for code_emb_forward.1']
    #allocation7 [shape = 'u8[8192]{0}', space=vmem, size = 0x2000, scoped, tag = 'output window, operand 0, single buffered']
    %15 = vsyncpa [#allocation5], 0
    %16 = vsyncpa [#allocation6], 0
    // Predicated region
    $region2: #{code_emb_forward.1} parent=1 // pred_check
      _
    $region3: #{code_emb_forward.1} parent=1 // pred_check_branch
      %18 = sbr.rel (0) target = $region5
    $region4: #{code_emb_forward.1} parent=1 // pred_region
      %20 = vsyncadd [#allocation5], 0
      %s21 = sshll.u32 %s1, 4
      %s22 = int_to_ptr.hbm [resolvable:$true] %s21
      %s23 = sshll.u32 [#allocation4], 4
      %s24 = int_to_ptr.vmem [resolvable:$true] %s23
      %29 = dma.hbm_to_vmem [thread:$0]  %s22, 30336, %s24, [#allocation5], 128, 128, 8
    $region5: #{code_emb_forward.1} parent=1 // pred_fallthru
      _
    // Predicated region
    $region6: #{code_emb_forward.1} parent=1 // pred_check
      _
    $region7: #{code_emb_forward.1} parent=1 // pred_check_branch
      %31 = sbr.rel (0) target = $region9
    $region8: #{code_emb_forward.1} parent=1 // pred_region
      %33 = dma.done [#allocation5], 30336
    $region9: #{code_emb_forward.1} parent=1 // pred_fallthru
      _
    %s34 = smul.u32 0, 16
    loop: start=0, step=1, limit=16
    $region10: #{code_emb_forward.1} parent=1 // loop_pre_header
      _
    $region11: #{code_emb_forward.1} parent=1 // loop_header
      %s36 = sphi 0, %s40
      %p37 = scmp.ge.s32.totalorder %s36, 16
    $region12: #{code_emb_forward.1} parent=1 // loop_header_branch
      %39 = sbr.rel (%p37) target = $region16
    $region13: #{code_emb_forward.1} parent=1 // loop_body
      %s41 = sadd.s32 %s34, %s36
      %s42 = sld [smem:[#allocation3 + %s41]]
      %s43 = scalar_lea.vmem [#allocation4], %s42
      %v44 = vld [vmem:[%s43] sm:$0x1]
      %s45 = scalar_lea.vmem [#allocation7], %s36
      %46 = vst [vmem:[%s45] sm:$0x1] %v44
    $region14: #{code_emb_forward.1} parent=1 // loop_footer
      %s40 = sadd.s32 1, %s36
    $region15: #{code_emb_forward.1} parent=1 // loop_footer_branch
      %35 = sbr.rel target = $region11
    $region16: #{code_emb_forward.1} parent=1 // loop_exit
      _
    // Predicated region
    $region17: #{code_emb_forward.1} parent=1 // pred_check
      _
    $region18: #{code_emb_forward.1} parent=1 // pred_check_branch
      %48 = sbr.rel (0) target = $region20
    $region19: #{code_emb_forward.1} parent=1 // pred_region
      %50 = vsyncadd [#allocation6], 0
      %s51 = sshll.u32 [#allocation7], 4
      %s52 = int_to_ptr.vmem [resolvable:$true] %s51
      %s53 = sshll.u32 %s2, 4
      %s54 = int_to_ptr.hbm [resolvable:$true] %s53
      %59 = dma.vmem_to_hbm [thread:$0]  %s52, 256, %s54, [#allocation6], 128, 128, 8
    $region20: #{code_emb_forward.1} parent=1 // pred_fallthru
      _
    // Predicated region
    $region21: #{code_emb_forward.1} parent=1 // pred_check
      _
    $region22: #{code_emb_forward.1} parent=1 // pred_check_branch
      %61 = sbr.rel (0) target = $region24
    $region23: #{code_emb_forward.1} parent=1 // pred_region
      %63 = dma.done [#allocation6], 256
    $region24: #{code_emb_forward.1} parent=1 // pred_fallthru
      _
    %64 = vsyncpa [#allocation5], 1
    %65 = vsyncpa [#allocation6], 1

</llo_original>
